<compile_context>
chip_gen: v5e
topology: v5e:2x2
jax: 0.10.0
libtpu: 0.0.40
codegen_flags: <defaults>
</compile_context>

<pallas_src>
import functools

import jax
import jax.numpy as jnp
from jax.experimental import pallas as pl
from jax.experimental.pallas import tpu as pltpu


def _round_up(v, m):
    return (v + m - 1) // m * m


def _pick_tm(n8, tm_cap):
    """Pick the batch tile TM (multiple of 8).

    Prefers (a) >= 2 grid steps when the batch allows it (megacore on v7x) and
    (b) a TM that divides round_up(N, 8) exactly, so the wrapper never has to
    materialize a padded copy of x beyond the <= 7-row sublane round-up.
    """
    if n8 >= 16:
        cap = max(8, min(tm_cap, (n8 // 2) // 8 * 8))
    else:
        cap = min(tm_cap, n8)
    tm = 8
    for cand in range(cap, 7, -8):
        if n8 % cand == 0:
            tm = cand
            break
    # Fallback: if the only exact divisor is tiny for a large batch, accept a
    # padded last tile rather than drowning in per-grid-step overhead.
    if tm < 128 and n8 >= 1024:
        tm = cap
    return tm


def _conv_relu_kernel(x_ref, w_ref, b_ref, o_ref):
    # x_ref: (TM, K)        f32 flattened image tile (cast to bf16 here)
    # w_ref: (K, OC_pad)    bf16 flattened conv filters (VMEM-resident)
    # b_ref: (1, OC_pad)    f32 bias (zero in padded lanes)
    # o_ref: (TM, OC_pad)   bf16 output tile (lane-dense store)
    x_bf16 = x_ref[...].astype(jnp.bfloat16)
    acc = jnp.dot(x_bf16, w_ref[...], preferred_element_type=jnp.float32)
    acc = acc + b_ref[...]
    o_ref[...] = jnp.maximum(acc, 0.0).astype(o_ref.dtype)


@functools.partial(jax.jit, static_argnames=("tm_cap",))
def cnn_forward(x, conv_w, conv_b, *, tm_cap=2048):
    """x: (N, C, 28, 28) f32, conv_w: (10, C, 28, 28) f32, conv_b: (10,) f32.

    Returns (N, 10) float32, matching ReLU(Conv2d(...)(x)).view(N, -1).
    On v7x, tm_cap can be raised to 4096 (still fits 64 MiB VMEM with the
    explicit vmem_limit_bytes below).
    """
    N, C, H, W = x.shape
    OC, IC, KH, KW = conv_w.shape
    assert (H, W) == (KH, KW), "full-image conv: kernel must equal input size"
    assert C == IC

    K = C * KH * KW                    # 784 for MNIST (no K padding)
    OC_pad = _round_up(OC, 128)        # 10 -> 128 (lane-dense output store)

    N8 = _round_up(N, 8)
    TM = _pick_tm(N8, tm_cap)
    N_pad = _round_up(N8, TM)

    # --- host-side layout plumbing (x: reshape only, no pad/cast pass) -----
    x_flat = x.reshape(N, K)                                    # f32, free
    if N_pad != N:
        x_flat = jnp.pad(x_flat, ((0, N_pad - N), (0, 0)))      # only when needed

    w_flat = conv_w.reshape(OC, K).T                            # (K, OC), tiny
    w_flat = jnp.pad(w_flat, ((0, 0), (0, OC_pad - OC)))
    w_flat = w_flat.astype(jnp.bfloat16)                        # (K, OC_pad)

    b_row = jnp.pad(conv_b.reshape(1, OC), ((0, 0), (0, OC_pad - OC)))
    b_row = b_row.astype(jnp.float32)                           # (1, OC_pad)

    grid = (N_pad // TM,)

    # VMEM budget: double-buffered x + out tiles, weights/bias resident.
    vmem_bytes = (2 * TM * K * 4          # x tiles (f32, double-buffered)
                  + 2 * TM * OC_pad * 2   # out tiles (bf16, double-buffered)
                  + 2 * K * OC_pad * 2    # weights (bf16, worst-case 2 bufs)
                  + 2 * OC_pad * 4)       # bias
    vmem_limit = min(int(vmem_bytes * 1.25) + (2 << 20), 56 << 20)

    cost = pl.CostEstimate(
        flops=2 * N_pad * K * OC_pad,
        transcendentals=0,
        bytes_accessed=(N_pad * K * 4            # x read (f32, in place)
                        + K * OC_pad * 2         # weights read (bf16)
                        + OC_pad * 4             # bias read
                        + N_pad * OC_pad * 2),   # output write (bf16)
    )

    out = pl.pallas_call(
        _conv_relu_kernel,
        out_shape=jax.ShapeDtypeStruct((N_pad, OC_pad), jnp.bfloat16),
        grid=grid,
        in_specs=[
            pl.BlockSpec((TM, K), lambda i: (i, 0)),          # x: tiled over N
            pl.BlockSpec((K, OC_pad), lambda i: (0, 0)),      # w: VMEM-resident
            pl.BlockSpec((1, OC_pad), lambda i: (0, 0)),      # b: VMEM-resident
        ],
        out_specs=pl.BlockSpec((TM, OC_pad), lambda i: (i, 0)),
        compiler_params=pltpu.CompilerParams(
            dimension_semantics=("parallel",),                # megacore sharding
            vmem_limit_bytes=vmem_limit,
        ),
        cost_estimate=cost,
    )(x_flat, w_flat, b_row)

    # Padded rows [N:N_pad) hold ReLU(bias); discarded here. Tiny final cast.
    return out[:N, :OC].astype(jnp.float32)


def reference_forward(x, conv_w, conv_b):
    """Pure-JAX reference: Conv2d(full-image, no pad) + ReLU + flatten.

    Mirrors the kernel's bf16 matmul inputs / f32 accumulation so the check
    is tight (kernel additionally rounds the output to bf16).
    """
    N, C, H, W = x.shape
    OC = conv_w.shape[0]
    x_flat = x.reshape(N, C * H * W).astype(jnp.bfloat16).astype(jnp.float32)
    w_flat = conv_w.reshape(OC, C * H * W).astype(jnp.bfloat16).astype(jnp.float32)
    y = x_flat @ w_flat.T + conv_b[None, :]
    return jnp.maximum(y, 0.0)


if __name__ == "__main__":
    key = jax.random.PRNGKey(0)
    k_x, k_w, k_b = jax.random.split(key, 3)

    # Small shapes consistent with the module: MNIST-like, batch=2, 1 channel.
    N, C, H, W = 2, 1, 28, 28
    OC = 10

    x = jax.random.normal(k_x, (N, C, H, W), dtype=jnp.float32)

    # Deterministic synthetic parameters (PyTorch-style uniform fan-in init).
    fan_in = C * 28 * 28
    bound = 1.0 / (fan_in ** 0.5)
    conv_w = jax.random.uniform(k_w, (OC, C, 28, 28), jnp.float32, -bound, bound)
    conv_b = jax.random.uniform(k_b, (OC,), jnp.float32, -bound, bound)

    out = cnn_forward(x, conv_w, conv_b)
    out = jax.block_until_ready(out)

    ref = reference_forward(x, conv_w, conv_b)
    assert out.shape == (N, OC), out.shape
    assert jnp.allclose(out, ref, atol=2e-2, rtol=2e-2), (
        float(jnp.max(jnp.abs(out - ref)))
    )
    # Also confirm it stays close to the exact f32 conv (bf16 rounding only).
    ref_f32 = jnp.maximum(
        x.reshape(N, -1) @ conv_w.reshape(OC, -1).T + conv_b[None, :], 0.0)
    assert jnp.allclose(out, ref_f32, atol=5e-2, rtol=5e-2), (
        float(jnp.max(jnp.abs(out - ref_f32)))
    )
    print("KERNEL_OK")
</pallas_src>

<mosaic_0001>
module attributes {stable_mosaic.version = 11 : i64} {
  func.func @_conv_relu_kernel(%arg0: i32, %arg1: memref<8x784xf32, #tpu.memory_space<vmem>>, %arg2: memref<784x128xbf16, #tpu.memory_space<vmem>>, %arg3: memref<1x128xf32, #tpu.memory_space<vmem>>, %arg4: memref<8x128xbf16, #tpu.memory_space<vmem>>) attributes {dimension_semantics = [#tpu.dimension_semantics<parallel>], iteration_bounds = array<i64: 1>, scalar_prefetch = 0 : i64, scratch_operands = 0 : i64, tpu.core_type = #tpu.core_type<tc>, window_params = [{transform_indices = @transform_0, window_bounds = array<i64: 8, 784>}, {pipeline_mode = #tpu.pipeline_mode<synchronous>, transform_indices = @transform_1, window_bounds = array<i64: 784, 128>}, {pipeline_mode = #tpu.pipeline_mode<synchronous>, transform_indices = @transform_2, window_bounds = array<i64: 1, 128>}, {transform_indices = @transform_3, window_bounds = array<i64: 8, 128>}]} {
    %c0 = arith.constant 0 : index
    %c0_0 = arith.constant 0 : index
    %0 = vector.load %arg1[%c0, %c0_0] : memref<8x784xf32, #tpu.memory_space<vmem>>, vector<8x784xf32>
    %1 = arith.truncf %0 : vector<8x784xf32> to vector<8x784xbf16>
    %c0_1 = arith.constant 0 : index
    %c0_2 = arith.constant 0 : index
    %2 = vector.load %arg2[%c0_1, %c0_2] : memref<784x128xbf16, #tpu.memory_space<vmem>>, vector<784x128xbf16>
    %cst = arith.constant dense<0.000000e+00> : vector<8x128xf32>
    %3 = tpu.matmul %1, %2, %cst {dimension_numbers = #tpu.dot_dimension_numbers<[1], [0], [0], [1], [0, 0, 1, 1], [], []>} : vector<8x784xbf16>, vector<784x128xbf16>, vector<8x128xf32> -> vector<8x128xf32>
    %c0_3 = arith.constant 0 : index
    %c0_4 = arith.constant 0 : index
    %4 = vector.load %arg3[%c0_3, %c0_4] : memref<1x128xf32, #tpu.memory_space<vmem>>, vector<1x128xf32>
    %5 = vector.broadcast %4 : vector<1x128xf32> to vector<8x128xf32>
    %6 = arith.addf %3, %5 : vector<8x128xf32>
    %cst_5 = arith.constant 0.000000e+00 : f32
    %7 = vector.broadcast %cst_5 : f32 to vector<8x128xf32>
    %8 = arith.maximumf %6, %7 : vector<8x128xf32>
    %9 = arith.truncf %8 : vector<8x128xf32> to vector<8x128xbf16>
    %c0_6 = arith.constant 0 : index
    %c0_7 = arith.constant 0 : index
    %10 = vector.load %arg4[%c0_6, %c0_7] : memref<8x128xbf16, #tpu.memory_space<vmem>>, vector<8x128xbf16>
    tpu.vector_store %arg4[%c0_6, %c0_7], %9 {strides = array<i32>} : memref<8x128xbf16, #tpu.memory_space<vmem>>, vector<8x128xbf16>,
    return
  }
  func.func @transform_0(%arg0: i32) -> (i32, i32) {
    %c0_i32 = arith.constant 0 : i32
    %c0_i32_0 = arith.constant 0 : i32
    return %arg0, %c0_i32 : i32, i32
  }
  func.func @transform_1(%arg0: i32) -> (i32, i32) {
    %c0_i32 = arith.constant 0 : i32
    %c0_i32_0 = arith.constant 0 : i32
    %c0_i32_1 = arith.constant 0 : i32
    return %c0_i32, %c0_i32_0 : i32, i32
  }
  func.func @transform_2(%arg0: i32) -> (i32, i32) {
    %c0_i32 = arith.constant 0 : i32
    %c0_i32_0 = arith.constant 0 : i32
    %c0_i32_1 = arith.constant 0 : i32
    return %c0_i32, %c0_i32_0 : i32, i32
  }
  func.func @transform_3(%arg0: i32) -> (i32, i32) {
    %c0_i32 = arith.constant 0 : i32
    %c0_i32_0 = arith.constant 0 : i32
    return %arg0, %c0_i32 : i32, i32
  }
}

</mosaic_0001>

<llo_original>
// kernel: cnn_forward.1
$region0: #{cnn_forward.1}
  #allocation0 [shape = 'u32[]', space=smem, size = 0x4, offset = 0x4, fixed_abs, tag = 'smem constant byte address 0x4 - core index']
  #allocation1 [shape = 'u32[72,128]{1,0:T(1,128)}', space=vmem, size = 0x9000, scoped, tag = 'internal scratch']
  %s0 = inlined_call_operand.vmem [shape: f32[8,784], index: 0, kind: input, shape index: {}]
  %s1 = inlined_call_operand.vmem [shape: bf16[784,128], index: 1, kind: input, shape index: {}]
  %s2 = inlined_call_operand.vmem [shape: f32[1,128], index: 2, kind: input, shape index: {}]
  %s3 = inlined_call_operand.vmem [shape: bf16[8,128], index: 3, kind: output, shape index: {}]
  %s4 = sld [smem:[#allocation0]]
  $region22: #{cnn_forward.1} parent=0
    _
  %s6 = ssub.s32 1, %s4
  %s7 = scalar_select 0, %s6, %s4
  // Predicated region
  $region2: #{cnn_forward.1} parent=0 // pred_check
    _
  $region3: #{cnn_forward.1} parent=0 // pred_check_branch
    %9 = sbr.rel (0) target = $region5
  $region4: #{cnn_forward.1} parent=0 // pred_region
    _
  $region5: #{cnn_forward.1} parent=0 // pred_fallthru
    _
  // Predicated region
  $region6: #{cnn_forward.1} parent=0 // pred_check
    _
  $region7: #{cnn_forward.1} parent=0 // pred_check_branch
    %11 = sbr.rel (0) target = $region9
  $region8: #{cnn_forward.1} parent=0 // pred_region
    _
  $region9: #{cnn_forward.1} parent=0 // pred_fallthru
    _
  // Predicated region
  $region10: #{cnn_forward.1} parent=0 // pred_check
    _
  $region11: #{cnn_forward.1} parent=0 // pred_check_branch
    %13 = sbr.rel (0) target = $region13
  $region12: #{cnn_forward.1} parent=0 // pred_region
    _
  $region13: #{cnn_forward.1} parent=0 // pred_fallthru
    _
  %v15 = vld [vmem:[%s0] sm:$0xff]
  %v16 = vld [vmem:[%s0 + $0x8] sm:$0xff]
  %v17 = vld [vmem:[%s0 + $0x10] sm:$0xff]
  %v18 = vld [vmem:[%s0 + $0x18] sm:$0xff]
  %v19 = vld [vmem:[%s0 + $0x20] sm:$0xff]
  %v20 = vld [vmem:[%s0 + $0x28] sm:$0xff]
  %v21 = vld [vmem:[%s0 + $0x30] sm:$0xff]
  %v22 = vpack.c.bf16 %v15, %v15
  %v23 = vpack.c.bf16 %v16, %v16
  %v24 = vpack.c.bf16 %v17, %v17
  %v25 = vpack.c.bf16 %v18, %v18
  %v26 = vpack.c.bf16 %v19, %v19
  %v27 = vpack.c.bf16 %v20, %v20
  %v28 = vpack.c.bf16 %v21, %v21
  %v29 = vld [vmem:[%s1] sm:$0xf]
  %v30 = vld [vmem:[%s1 + $0x4] sm:$0xf]
  %v31 = vld [vmem:[%s1 + $0x8] sm:$0xf]
  %v32 = vld [vmem:[%s1 + $0xc] sm:$0xf]
  %v33 = vld [vmem:[%s1 + $0x10] sm:$0xf]
  %v34 = vld [vmem:[%s1 + $0x14] sm:$0xf]
  %v35 = vld [vmem:[%s1 + $0x18] sm:$0xf]
  %v36 = vld [vmem:[%s1 + $0x1c] sm:$0xf]
  %v37 = vld [vmem:[%s1 + $0x20] sm:$0xf]
  %v38 = vld [vmem:[%s1 + $0x24] sm:$0xf]
  %v39 = vld [vmem:[%s1 + $0x28] sm:$0xf]
  %v40 = vld [vmem:[%s1 + $0x2c] sm:$0xf]
  %v41 = vld [vmem:[%s1 + $0x30] sm:$0xf]
  %v42 = vld [vmem:[%s1 + $0x34] sm:$0xf]
  %v43 = vld [vmem:[%s1 + $0x38] sm:$0xf]
  %v44 = vld [vmem:[%s1 + $0x3c] sm:$0xf]
  %v45 = vld [vmem:[%s1 + $0x40] sm:$0xf]
  %v46 = vld [vmem:[%s1 + $0x44] sm:$0xf]
  %v47 = vld [vmem:[%s1 + $0x48] sm:$0xf]
  %v48 = vld [vmem:[%s1 + $0x4c] sm:$0xf]
  %v49 = vld [vmem:[%s1 + $0x50] sm:$0xf]
  %v50 = vld [vmem:[%s1 + $0x54] sm:$0xf]
  %v51 = vld [vmem:[%s1 + $0x58] sm:$0xf]
  %v52 = vld [vmem:[%s1 + $0x5c] sm:$0xf]
  %v53 = vld [vmem:[%s1 + $0x60] sm:$0xf]
  %v54 = vld [vmem:[%s1 + $0x64] sm:$0xf]
  %v55 = vld [vmem:[%s1 + $0x68] sm:$0xf]
  %v56 = vld [vmem:[%s1 + $0x6c] sm:$0xf]
  %v57 = vld [vmem:[%s1 + $0x70] sm:$0xf]
  %v58 = vld [vmem:[%s1 + $0x74] sm:$0xf]
  %v59 = vld [vmem:[%s1 + $0x78] sm:$0xf]
  %v60 = vld [vmem:[%s1 + $0x7c] sm:$0xf]
  %v61 = vld [vmem:[%s1 + $0x80] sm:$0xf]
  %v62 = vld [vmem:[%s1 + $0x84] sm:$0xf]
  %v63 = vld [vmem:[%s1 + $0x88] sm:$0xf]
  %v64 = vld [vmem:[%s1 + $0x8c] sm:$0xf]
  %v65 = vld [vmem:[%s1 + $0x90] sm:$0xf]
  %v66 = vld [vmem:[%s1 + $0x94] sm:$0xf]
  %v67 = vld [vmem:[%s1 + $0x98] sm:$0xf]
  %v68 = vld [vmem:[%s1 + $0x9c] sm:$0xf]
  %v69 = vld [vmem:[%s1 + $0xa0] sm:$0xf]
  %v70 = vld [vmem:[%s1 + $0xa4] sm:$0xf]
  %v71 = vld [vmem:[%s1 + $0xa8] sm:$0xf]
  %v72 = vld [vmem:[%s1 + $0xac] sm:$0xf]
  %v73 = vld [vmem:[%s1 + $0xb0] sm:$0xf]
  %v74 = vld [vmem:[%s1 + $0xb4] sm:$0xf]
  %v75 = vld [vmem:[%s1 + $0xb8] sm:$0xf]
  %v76 = vld [vmem:[%s1 + $0xbc] sm:$0xf]
  %v77 = vld [vmem:[%s1 + $0xc0] sm:$0xf]
  %v78 = vld [vmem:[%s1 + $0xc4] sm:$0xf]
  %v79 = vld [vmem:[%s1 + $0xc8] sm:$0xf]
  %v80 = vld [vmem:[%s1 + $0xcc] sm:$0xf]
  %v81 = vld [vmem:[%s1 + $0xd0] sm:$0xf]
  %v82 = vld [vmem:[%s1 + $0xd4] sm:$0xf]
  %v83 = vld [vmem:[%s1 + $0xd8] sm:$0xf]
  %v84 = vld [vmem:[%s1 + $0xdc] sm:$0xf]
  %v85 = vld [vmem:[%s1 + $0xe0] sm:$0xf]
  %v86 = vld [vmem:[%s1 + $0xe4] sm:$0xf]
  %v87 = vld [vmem:[%s1 + $0xe8] sm:$0xf]
  %v88 = vld [vmem:[%s1 + $0xec] sm:$0xf]
  %v89 = vld [vmem:[%s1 + $0xf0] sm:$0xf]
  %v90 = vld [vmem:[%s1 + $0xf4] sm:$0xf]
  %v91 = vld [vmem:[%s1 + $0xf8] sm:$0xf]
  %v92 = vld [vmem:[%s1 + $0xfc] sm:$0xf]
  %v93 = vld [vmem:[%s1 + $0x100] sm:$0xf]
  %v94 = vld [vmem:[%s1 + $0x104] sm:$0xf]
  %v95 = vld [vmem:[%s1 + $0x108] sm:$0xf]
  %v96 = vld [vmem:[%s1 + $0x10c] sm:$0xf]
  %v97 = vld [vmem:[%s1 + $0x110] sm:$0xf]
  %v98 = vld [vmem:[%s1 + $0x114] sm:$0xf]
  %v99 = vld [vmem:[%s1 + $0x118] sm:$0xf]
  %v100 = vld [vmem:[%s1 + $0x11c] sm:$0xf]
  %v101 = vld [vmem:[%s1 + $0x120] sm:$0xf]
  %v102 = vld [vmem:[%s1 + $0x124] sm:$0xf]
  %v103 = vld [vmem:[%s1 + $0x128] sm:$0xf]
  %v104 = vld [vmem:[%s1 + $0x12c] sm:$0xf]
  %v105 = vld [vmem:[%s1 + $0x130] sm:$0xf]
  %v106 = vld [vmem:[%s1 + $0x134] sm:$0xf]
  %v107 = vld [vmem:[%s1 + $0x138] sm:$0xf]
  %v108 = vld [vmem:[%s1 + $0x13c] sm:$0xf]
  %v109 = vld [vmem:[%s1 + $0x140] sm:$0xf]
  %v110 = vld [vmem:[%s1 + $0x144] sm:$0xf]
  %v111 = vld [vmem:[%s1 + $0x148] sm:$0xf]
  %v112 = vld [vmem:[%s1 + $0x14c] sm:$0xf]
  %v113 = vld [vmem:[%s1 + $0x150] sm:$0xf]
  %v114 = vld [vmem:[%s1 + $0x154] sm:$0xf]
  %v115 = vld [vmem:[%s1 + $0x158] sm:$0xf]
  %v116 = vld [vmem:[%s1 + $0x15c] sm:$0xf]
  %v117 = vld [vmem:[%s1 + $0x160] sm:$0xf]
  %v118 = vld [vmem:[%s1 + $0x164] sm:$0xf]
  %v119 = vld [vmem:[%s1 + $0x168] sm:$0xf]
  %v120 = vld [vmem:[%s1 + $0x16c] sm:$0xf]
  %v121 = vld [vmem:[%s1 + $0x170] sm:$0xf]
  %v122 = vld [vmem:[%s1 + $0x174] sm:$0xf]
  %v123 = vld [vmem:[%s1 + $0x178] sm:$0xf]
  %v124 = vld [vmem:[%s1 + $0x17c] sm:$0xf]
  %v125 = vld [vmem:[%s1 + $0x180] sm:$0xf]
  %v126 = vld [vmem:[%s1 + $0x184] sm:$0xf]
  %v127 = vld [vmem:[%s2] sm:$0x1]
  %v129 = vperm.slane %v127, 0
  %v229 = vunpack.c.l.b16 %v29
  %v230 = vunpack.c.l.b16 %v30
  %v231 = vunpack.c.l.b16 %v31
  %v232 = vunpack.c.l.b16 %v32
  %v233 = vunpack.c.l.b16 %v33
  %v234 = vunpack.c.l.b16 %v34
  %v235 = vunpack.c.l.b16 %v35
  %v236 = vunpack.c.l.b16 %v36
  %v237 = vunpack.c.l.b16 %v37
  %v238 = vunpack.c.l.b16 %v38
  %v239 = vunpack.c.l.b16 %v39
  %v240 = vunpack.c.l.b16 %v40
  %v241 = vunpack.c.l.b16 %v41
  %v242 = vunpack.c.l.b16 %v42
  %v243 = vunpack.c.l.b16 %v43
  %v244 = vunpack.c.l.b16 %v44
  %v245 = vunpack.c.l.b16 %v45
  %v246 = vunpack.c.l.b16 %v46
  %v247 = vunpack.c.l.b16 %v47
  %v248 = vunpack.c.l.b16 %v48
  %v249 = vunpack.c.l.b16 %v49
  %v250 = vunpack.c.l.b16 %v50
  %v251 = vunpack.c.l.b16 %v51
  %v252 = vunpack.c.l.b16 %v52
  %v253 = vunpack.c.l.b16 %v53
  %v254 = vunpack.c.l.b16 %v54
  %v255 = vunpack.c.l.b16 %v55
  %v256 = vunpack.c.l.b16 %v56
  %v257 = vunpack.c.l.b16 %v57
  %v258 = vunpack.c.l.b16 %v58
  %v259 = vunpack.c.l.b16 %v59
  %v260 = vunpack.c.l.b16 %v60
  %v261 = vunpack.c.l.b16 %v61
  %v262 = vunpack.c.l.b16 %v62
  %v263 = vunpack.c.l.b16 %v63
  %v264 = vunpack.c.l.b16 %v64
  %v265 = vunpack.c.l.b16 %v65
  %v266 = vunpack.c.l.b16 %v66
  %v267 = vunpack.c.l.b16 %v67
  %v268 = vunpack.c.l.b16 %v68
  %v269 = vunpack.c.l.b16 %v69
  %v270 = vunpack.c.l.b16 %v70
  %v271 = vunpack.c.l.b16 %v71
  %v272 = vunpack.c.l.b16 %v72
  %v273 = vunpack.c.l.b16 %v73
  %v274 = vunpack.c.l.b16 %v74
  %v275 = vunpack.c.l.b16 %v75
  %v276 = vunpack.c.l.b16 %v76
  %v277 = vunpack.c.l.b16 %v77
  %v278 = vunpack.c.l.b16 %v78
  %v279 = vunpack.c.l.b16 %v79
  %v280 = vunpack.c.l.b16 %v80
  %v281 = vunpack.c.l.b16 %v81
  %v282 = vunpack.c.l.b16 %v82
  %v283 = vunpack.c.l.b16 %v83
  %v284 = vunpack.c.l.b16 %v84
  %v285 = vunpack.c.l.b16 %v85
  %v286 = vunpack.c.l.b16 %v86
  %v287 = vunpack.c.l.b16 %v87
  %v288 = vunpack.c.l.b16 %v88
  %v289 = vunpack.c.l.b16 %v89
  %v290 = vunpack.c.l.b16 %v90
  %v291 = vunpack.c.l.b16 %v91
  %v292 = vunpack.c.l.b16 %v92
  %v293 = vunpack.c.l.b16 %v93
  %v294 = vunpack.c.l.b16 %v94
  %v295 = vunpack.c.l.b16 %v95
  %v296 = vunpack.c.l.b16 %v96
  %v297 = vunpack.c.l.b16 %v97
  %v298 = vunpack.c.l.b16 %v98
  %v299 = vunpack.c.l.b16 %v99
  %v300 = vunpack.c.l.b16 %v100
  %v301 = vunpack.c.l.b16 %v101
  %v302 = vunpack.c.l.b16 %v102
  %v303 = vunpack.c.l.b16 %v103
  %v304 = vunpack.c.l.b16 %v104
  %v305 = vunpack.c.l.b16 %v105
  %v306 = vunpack.c.l.b16 %v106
  %v307 = vunpack.c.l.b16 %v107
  %v308 = vunpack.c.l.b16 %v108
  %v309 = vunpack.c.l.b16 %v109
  %v310 = vunpack.c.l.b16 %v110
  %v311 = vunpack.c.l.b16 %v111
  %v312 = vunpack.c.l.b16 %v112
  %v313 = vunpack.c.l.b16 %v113
  %v314 = vunpack.c.l.b16 %v114
  %v315 = vunpack.c.l.b16 %v115
  %v316 = vunpack.c.l.b16 %v116
  %v317 = vunpack.c.l.b16 %v117
  %v318 = vunpack.c.l.b16 %v118
  %v319 = vunpack.c.l.b16 %v119
  %v320 = vunpack.c.l.b16 %v120
  %v321 = vunpack.c.l.b16 %v121
  %v322 = vunpack.c.l.b16 %v122
  %v323 = vunpack.c.l.b16 %v123
  %v324 = vunpack.c.l.b16 %v124
  %v325 = vunpack.c.l.b16 %v125
  %v326 = vunpack.c.l.b16 %v126
  %v327 = vpack.c.b16 %v230, %v229
  %v328 = vpack.c.b16 %v232, %v231
  %v329 = vpack.c.b16 %v234, %v233
  %v330 = vpack.c.b16 %v236, %v235
  %v331 = vpack.c.b16 %v238, %v237
  %v332 = vpack.c.b16 %v240, %v239
  %v333 = vpack.c.b16 %v242, %v241
  %v334 = vpack.c.b16 %v244, %v243
  %v335 = vpack.c.b16 %v246, %v245
  %v336 = vpack.c.b16 %v248, %v247
  %v337 = vpack.c.b16 %v250, %v249
  %v338 = vpack.c.b16 %v252, %v251
  %v339 = vpack.c.b16 %v254, %v253
  %v340 = vpack.c.b16 %v256, %v255
  %v341 = vpack.c.b16 %v258, %v257
  %v342 = vpack.c.b16 %v260, %v259
  %v343 = vpack.c.b16 %v262, %v261
  %v344 = vpack.c.b16 %v264, %v263
  %v345 = vpack.c.b16 %v266, %v265
  %v346 = vpack.c.b16 %v268, %v267
  %v347 = vpack.c.b16 %v270, %v269
  %v348 = vpack.c.b16 %v272, %v271
  %v349 = vpack.c.b16 %v274, %v273
  %v350 = vpack.c.b16 %v276, %v275
  %v351 = vpack.c.b16 %v278, %v277
  %v352 = vpack.c.b16 %v280, %v279
  %v353 = vpack.c.b16 %v282, %v281
  %v354 = vpack.c.b16 %v284, %v283
  %v355 = vpack.c.b16 %v286, %v285
  %v356 = vpack.c.b16 %v288, %v287
  %v357 = vpack.c.b16 %v290, %v289
  %v358 = vpack.c.b16 %v292, %v291
  %v359 = vpack.c.b16 %v294, %v293
  %v360 = vpack.c.b16 %v296, %v295
  %v361 = vpack.c.b16 %v298, %v297
  %v362 = vpack.c.b16 %v300, %v299
  %v363 = vpack.c.b16 %v302, %v301
  %v364 = vpack.c.b16 %v304, %v303
  %v365 = vpack.c.b16 %v306, %v305
  %v366 = vpack.c.b16 %v308, %v307
  %v367 = vpack.c.b16 %v310, %v309
  %v368 = vpack.c.b16 %v312, %v311
  %v369 = vpack.c.b16 %v314, %v313
  %v370 = vpack.c.b16 %v316, %v315
  %v371 = vpack.c.b16 %v318, %v317
  %v372 = vpack.c.b16 %v320, %v319
  %v373 = vpack.c.b16 %v322, %v321
  %v374 = vpack.c.b16 %v324, %v323
  %v375 = vpack.c.b16 %v326, %v325
  %vm425 = vcmask 130048
  %v427 = vsel %vm425, %v28, 0
  %429 = vmatpush.bf16.msra.mxu0 %v334
  %430 = vmatpush.bf16.msra.mxu0 %v333
  %431 = vmatpush.bf16.msra.mxu0 %v332
  %432 = vmatpush.bf16.msra.mxu0 %v331
  %433 = vmatpush.bf16.msra.mxu0 %v330
  %434 = vmatpush.bf16.msra.mxu0 %v329
  %435 = vmatpush.bf16.msra.mxu0 %v328
  %436 = vmatpush.bf16.msra.mxu0 %v327
  %437 = vmatmul.bf16.gmra.mxu0 %v22
  %v438 = vpop.f32.mrf.mxu0
  %v439 = vadd.f32 %v129, %v438
  %v440 = vpop.f32.mrf.mxu0
  %441 = vdwg.mxu0
  %442 = vmatpush.bf16.msra.mxu0 %v342
  %443 = vmatpush.bf16.msra.mxu0 %v341
  %444 = vmatpush.bf16.msra.mxu0 %v340
  %445 = vmatpush.bf16.msra.mxu0 %v339
  %446 = vmatpush.bf16.msra.mxu0 %v338
  %447 = vmatpush.bf16.msra.mxu0 %v337
  %448 = vmatpush.bf16.msra.mxu0 %v336
  %449 = vmatpush.bf16.msra.mxu0 %v335
  %450 = vmatmul.bf16.gmra.mxu0 %v23
  %v451 = vpop.f32.mrf.mxu0
  %v452 = vadd.f32 %v439, %v451
  %v453 = vpop.f32.mrf.mxu0
  %454 = vdwg.mxu0
  %455 = vmatpush.bf16.msra.mxu0 %v350
  %456 = vmatpush.bf16.msra.mxu0 %v349
  %457 = vmatpush.bf16.msra.mxu0 %v348
  %458 = vmatpush.bf16.msra.mxu0 %v347
  %459 = vmatpush.bf16.msra.mxu0 %v346
  %460 = vmatpush.bf16.msra.mxu0 %v345
  %461 = vmatpush.bf16.msra.mxu0 %v344
  %462 = vmatpush.bf16.msra.mxu0 %v343
  %463 = vmatmul.bf16.gmra.mxu0 %v24
  %v464 = vpop.f32.mrf.mxu0
  %v465 = vadd.f32 %v452, %v464
  %v466 = vpop.f32.mrf.mxu0
  %467 = vdwg.mxu0
  %468 = vmatpush.bf16.msra.mxu0 %v358
  %469 = vmatpush.bf16.msra.mxu0 %v357
  %470 = vmatpush.bf16.msra.mxu0 %v356
  %471 = vmatpush.bf16.msra.mxu0 %v355
  %472 = vmatpush.bf16.msra.mxu0 %v354
  %473 = vmatpush.bf16.msra.mxu0 %v353
  %474 = vmatpush.bf16.msra.mxu0 %v352
  %475 = vmatpush.bf16.msra.mxu0 %v351
  %476 = vmatmul.bf16.gmra.mxu0 %v25
  %v477 = vpop.f32.mrf.mxu0
  %v478 = vadd.f32 %v465, %v477
  %v479 = vpop.f32.mrf.mxu0
  %480 = vdwg.mxu0
  %481 = vmatpush.bf16.msra.mxu0 %v366
  %482 = vmatpush.bf16.msra.mxu0 %v365
  %483 = vmatpush.bf16.msra.mxu0 %v364
  %484 = vmatpush.bf16.msra.mxu0 %v363
  %485 = vmatpush.bf16.msra.mxu0 %v362
  %486 = vmatpush.bf16.msra.mxu0 %v361
  %487 = vmatpush.bf16.msra.mxu0 %v360
  %488 = vmatpush.bf16.msra.mxu0 %v359
  %489 = vmatmul.bf16.gmra.mxu0 %v26
  %v490 = vpop.f32.mrf.mxu0
  %v491 = vadd.f32 %v478, %v490
  %v492 = vpop.f32.mrf.mxu0
  %493 = vdwg.mxu0
  %494 = vmatpush.bf16.msra.mxu0 %v374
  %495 = vmatpush.bf16.msra.mxu0 %v373
  %496 = vmatpush.bf16.msra.mxu0 %v372
  %497 = vmatpush.bf16.msra.mxu0 %v371
  %498 = vmatpush.bf16.msra.mxu0 %v370
  %499 = vmatpush.bf16.msra.mxu0 %v369
  %500 = vmatpush.bf16.msra.mxu0 %v368
  %501 = vmatpush.bf16.msra.mxu0 %v367
  %502 = vmatmul.bf16.gmra.mxu0 %v27
  %v503 = vpop.f32.mrf.mxu0
  %v504 = vadd.f32 %v491, %v503
  %v505 = vpop.f32.mrf.mxu0
  %506 = vdwg.mxu0
  %507 = vmatpush.bf16.msra.mxu0 0
  %508 = vmatpush.bf16.msra.mxu0 0
  %509 = vmatpush.bf16.msra.mxu0 0
  %510 = vmatpush.bf16.msra.mxu0 0
  %511 = vmatpush.bf16.msra.mxu0 0
  %512 = vmatpush.bf16.msra.mxu0 0
  %513 = vmatpush.bf16.msra.mxu0 0
  %514 = vmatpush.bf16.msra.mxu0 %v375
  %515 = vmatmul.bf16.gmra.mxu0 %v427
  %v516 = vpop.f32.mrf.mxu0
  %v517 = vadd.f32 %v504, %v516
  %v518 = vpop.f32.mrf.mxu0
  %519 = vdwg.mxu0
  %v520 = vmax.f32 %v517, 0.0
  %v521 = vpack.c.bf16 %v520, %v520
  %522 = vst [vmem:[%s3] sm:$0xf] %v521
  // Predicated region
  $region14: #{cnn_forward.1} parent=0 // pred_check
    _
  $region15: #{cnn_forward.1} parent=0 // pred_check_branch
    %524 = sbr.rel (0) target = $region17
  $region16: #{cnn_forward.1} parent=0 // pred_region
    _
  $region17: #{cnn_forward.1} parent=0 // pred_fallthru
    _
  // Predicated region
  $region18: #{cnn_forward.1} parent=0 // pred_check
    _
  $region19: #{cnn_forward.1} parent=0 // pred_check_branch
    %526 = sbr.rel (0) target = $region21
  $region20: #{cnn_forward.1} parent=0 // pred_region
    _
  $region21: #{cnn_forward.1} parent=0 // pred_fallthru
    _

</llo_original>
